<compile_context>
chip_gen: v7x
topology: tpu7x:2x2x1
jax: 0.10.0
libtpu: 0.0.40
codegen_flags: <defaults>
</compile_context>

<pallas_src>
import functools
from math import sqrt

import jax
import jax.numpy as jnp
from jax.experimental import pallas as pl
from jax.experimental.pallas import tpu as pltpu


def _round_up(x, m):
    return ((x + m - 1) // m) * m


def _apply_activation(h, activation):
    if activation == "relu":
        return jnp.maximum(h, 0.0)
    if activation == "tanh":
        return jnp.tanh(h)
    if activation == "sigmoid":
        return jax.nn.sigmoid(h)
    if activation == "leaky_relu":
        # Module spec uses nn.LeakyReLU(0.2) (not torch's 0.01 default).
        return jnp.where(h > 0, h, 0.2 * h)
    raise ValueError(f"unsupported activation: {activation}")


def _fused_mlp_kernel(*refs, n_layers, activation):
    # refs = (x_ref, w0_ref, b0_ref, w1_ref, b1_ref, ..., o_ref)
    x_ref, o_ref = refs[0], refs[-1]
    param_refs = refs[1:-1]

    h = x_ref[...]  # (TB, K0p), compute dtype; stays on-chip between layers
    for li in range(n_layers):
        w_ref = param_refs[2 * li]       # (Kp, Np), compute dtype (bf16 default)
        b_ref = param_refs[2 * li + 1]   # (1, Np), f32
        acc = jnp.dot(h.astype(w_ref.dtype), w_ref[...],
                      preferred_element_type=jnp.float32)   # f32 accumulation
        acc = acc + b_ref[...]                              # f32 epilogue
        if li != n_layers - 1:
            acc = _apply_activation(acc, activation)
        h = acc
    o_ref[...] = h.astype(o_ref.dtype)


@functools.partial(
    jax.jit,
    static_argnames=("activation", "tb", "bpad", "single_buffer",
                     "vmem_limit_bytes"))
def _fused_mlp_forward(x_flat, padded_flat, *, activation, tb, bpad,
                       single_buffer, vmem_limit_bytes):
    batch, flat_dim = x_flat.shape
    compute_dtype = padded_flat[0].dtype
    k0p = padded_flat[0].shape[0]
    out_p_final = padded_flat[-2].shape[1]
    n_layers = len(padded_flat) // 2

    # Pad the (small, per-call) input only; weights were padded once at init.
    x_pad = jnp.zeros((bpad, k0p), jnp.float32)
    x_pad = x_pad.at[:batch, :flat_dim].set(x_flat.astype(jnp.float32))
    x_pad = x_pad.astype(compute_dtype)

    # Resident (grid-invariant) params: request single buffering if supported.
    w_kwargs = dict(pipeline_mode=pl.Buffered(1)) if single_buffer else {}

    in_specs = [pl.BlockSpec((tb, k0p), lambda i: (i, 0))]
    for arr in padded_flat:
        in_specs.append(pl.BlockSpec(arr.shape, lambda i: (0, 0), **w_kwargs))

    num_tiles = bpad // tb
    # <= 2 tiles: batch-parallel megacore split would just duplicate weight
    # DMA/VMEM residency per core — keep it "arbitrary".
    semantics = ("arbitrary",) if num_tiles <= 2 else ("parallel",)

    flops = 0
    trans = 0
    bytes_accessed = x_pad.size * x_pad.dtype.itemsize + bpad * out_p_final * 4
    for li in range(n_layers):
        wp = padded_flat[2 * li]
        bp = padded_flat[2 * li + 1]
        flops += 2 * bpad * wp.shape[0] * wp.shape[1]
        bytes_accessed += wp.size * wp.dtype.itemsize + bp.size * bp.dtype.itemsize
        if li != n_layers - 1 and activation in ("tanh", "sigmoid"):
            trans += bpad * wp.shape[1]

    kernel = functools.partial(_fused_mlp_kernel,
                               n_layers=n_layers, activation=activation)

    out_padded = pl.pallas_call(
        kernel,
        out_shape=jax.ShapeDtypeStruct((bpad, out_p_final), jnp.float32),
        grid=(num_tiles,),
        in_specs=in_specs,
        out_specs=pl.BlockSpec((tb, out_p_final), lambda i: (i, 0)),
        compiler_params=pltpu.CompilerParams(
            dimension_semantics=semantics,
            vmem_limit_bytes=vmem_limit_bytes),
        cost_estimate=pl.CostEstimate(flops=int(flops),
                                      transcendentals=int(trans),
                                      bytes_accessed=int(bytes_accessed)),
    )(x_pad, *padded_flat)
    return out_padded


class MLPEstimatorPallas:
    """Fused Pallas forward for MLP_Estimator (default config).

    params: list of (w, b) with w of shape (in_features, out_features),
    matching torch's x @ W.T for W of shape (out, in).
    """

    def __init__(self, params, *, activation="relu",
                 compute_dtype=jnp.bfloat16):
        self.activation = activation
        self.out_dim = params[-1][0].shape[1]
        self.flat_dim = params[0][0].shape[0]
        self.k0p = _round_up(self.flat_dim, 128)

        # --- pad + cast parameters ONCE (hoisted out of the hot path) -----
        padded = []
        prev_p = self.k0p
        max_np = 128
        for (w, b) in params:
            in_d, out_d = w.shape
            out_p = _round_up(out_d, 128)
            wp = (jnp.zeros((prev_p, out_p), jnp.float32)
                  .at[:in_d, :out_d].set(jnp.asarray(w, jnp.float32))
                  .astype(compute_dtype))
            bp = (jnp.zeros((1, out_p), jnp.float32)
                  .at[0, :out_d].set(jnp.asarray(b, jnp.float32).reshape(-1)))
            padded.extend([wp, bp])
            prev_p = out_p
            max_np = max(max_np, out_p)
        self.padded_flat = tuple(jax.block_until_ready(a) for a in padded)
        self.out_p_final = prev_p
        self.max_np = max_np

        # Bound tb so ~2 live (tb, max_np) f32 activation tiles stay well under
        # the 256 KiB vreg file (avoids spill vld/vst traffic).
        tb_cap = (128 * 1024) // (2 * 4 * max_np)
        self.tb_cap = max(8, (tb_cap // 8) * 8)

        self._param_bytes = sum(int(a.size) * a.dtype.itemsize
                                for a in self.padded_flat)
        self._single_buffer = None  # decided (with fallback) on first call

    def _vmem_limit(self, tb):
        act_bytes = 2 * (tb * self.k0p + tb * self.out_p_final
                         + 2 * tb * self.max_np) * 4
        est = 2 * self._param_bytes + act_bytes   # worst case: double-buffered
        return int(min(64 * 1024 * 1024,
                       max(int(1.5 * est), 16 * 1024 * 1024)))

    def __call__(self, x):
        batch = x.shape[0]
        x_flat = jnp.asarray(x).reshape(batch, -1)
        assert x_flat.shape[1] == self.flat_dim, "seq_len*input_dim mismatch"

        tb = min(self.tb_cap, _round_up(batch, 8))
        bpad = _round_up(batch, tb)
        vmem_limit = self._vmem_limit(tb)

        def run(single_buffer):
            return _fused_mlp_forward(
                x_flat, self.padded_flat,
                activation=self.activation, tb=tb, bpad=bpad,
                single_buffer=single_buffer, vmem_limit_bytes=vmem_limit)

        if self._single_buffer is None:
            try:
                out_padded = run(True)
                jax.block_until_ready(out_padded)
                self._single_buffer = True
            except Exception:
                # Installed Pallas rejected pipeline_mode=pl.Buffered(1);
                # fall back to default double-buffering.
                self._single_buffer = False
                out_padded = run(False)
        else:
            out_padded = run(self._single_buffer)

        return out_padded[:batch, :self.out_dim]


def init_mlp_params(key, input_dim, seq_len, hidden_dims, output_dim):
    """Deterministic init mirroring nn.Linear's default U(-1/sqrt(in), 1/sqrt(in))."""
    flat_dim = input_dim * seq_len
    dims = [flat_dim] + list(hidden_dims) + [output_dim]
    params = []
    for i in range(len(dims) - 1):
        in_d, out_d = dims[i], dims[i + 1]
        key, kw, kb = jax.random.split(key, 3)
        bound = 1.0 / sqrt(in_d)
        w = jax.random.uniform(kw, (in_d, out_d), jnp.float32, -bound, bound)
        b = jax.random.uniform(kb, (out_d,), jnp.float32, -bound, bound)
        params.append((w, b))
    return params


if __name__ == "__main__":
    # Small shapes consistent with the module's forward signature.
    batch, seq_len, input_dim = 2, 8, 4
    hidden_dims = [32, 32]
    output_dim = 3
    activation = "relu"

    key = jax.random.PRNGKey(0)
    key, kx = jax.random.split(key)
    x = jax.random.normal(kx, (batch, seq_len, input_dim), jnp.float32)
    params = init_mlp_params(key, input_dim, seq_len, hidden_dims, output_dim)

    # Pure-JAX reference (same math as the torch module with default config).
    h_ref = x.reshape(batch, -1)
    for i, (w, b) in enumerate(params):
        h_ref = h_ref @ w + b
        if i != len(params) - 1:
            h_ref = _apply_activation(h_ref, activation)

    # Fast path (default): bf16 matmuls, f32 accumulation -> loose tolerance.
    est_bf16 = MLPEstimatorPallas(params, activation=activation,
                                  compute_dtype=jnp.bfloat16)
    out_bf16 = est_bf16(x)
    jax.block_until_ready(out_bf16)
    assert out_bf16.shape == (batch, output_dim)
    assert jnp.allclose(out_bf16, h_ref, atol=1e-1, rtol=5e-2), \
        "bf16 fused MLP mismatch"

    # Strict path: full f32 compute -> tight tolerance.
    est_f32 = MLPEstimatorPallas(params, activation=activation,
                                 compute_dtype=jnp.float32)
    out_f32 = est_f32(x)
    jax.block_until_ready(out_f32)
    assert out_f32.shape == (batch, output_dim)
    assert jnp.allclose(out_f32, h_ref, atol=1e-5, rtol=1e-5), \
        "f32 fused MLP mismatch"

    print("KERNEL_OK")
</pallas_src>

<mosaic_0001>
module attributes {stable_mosaic.version = 11 : i64} {
  func.func @_fused_mlp_kernel(%arg0: i32, %arg1: memref<8x128xbf16, #tpu.memory_space<vmem>>, %arg2: memref<128x128xbf16, #tpu.memory_space<vmem>>, %arg3: memref<1x128xf32, #tpu.memory_space<vmem>>, %arg4: memref<128x128xbf16, #tpu.memory_space<vmem>>, %arg5: memref<1x128xf32, #tpu.memory_space<vmem>>, %arg6: memref<128x128xbf16, #tpu.memory_space<vmem>>, %arg7: memref<1x128xf32, #tpu.memory_space<vmem>>, %arg8: memref<8x128xf32, #tpu.memory_space<vmem>>) attributes {dimension_semantics = [#tpu.dimension_semantics<arbitrary>], iteration_bounds = array<i64: 1>, scalar_prefetch = 0 : i64, scratch_operands = 0 : i64, tpu.core_type = #tpu.core_type<tc>, window_params = [{transform_indices = @transform_0, window_bounds = array<i64: 8, 128>}, {pipeline_mode = #tpu.pipeline_mode<synchronous>, transform_indices = @transform_1, window_bounds = array<i64: 128, 128>}, {pipeline_mode = #tpu.pipeline_mode<synchronous>, transform_indices = @transform_2, window_bounds = array<i64: 1, 128>}, {pipeline_mode = #tpu.pipeline_mode<synchronous>, transform_indices = @transform_3, window_bounds = array<i64: 128, 128>}, {pipeline_mode = #tpu.pipeline_mode<synchronous>, transform_indices = @transform_4, window_bounds = array<i64: 1, 128>}, {pipeline_mode = #tpu.pipeline_mode<synchronous>, transform_indices = @transform_5, window_bounds = array<i64: 128, 128>}, {pipeline_mode = #tpu.pipeline_mode<synchronous>, transform_indices = @transform_6, window_bounds = array<i64: 1, 128>}, {transform_indices = @transform_7, window_bounds = array<i64: 8, 128>}]} {
    %c0 = arith.constant 0 : index
    %c0_0 = arith.constant 0 : index
    %0 = vector.load %arg1[%c0, %c0_0] : memref<8x128xbf16, #tpu.memory_space<vmem>>, vector<8x128xbf16>
    %c0_1 = arith.constant 0 : index
    %c0_2 = arith.constant 0 : index
    %1 = vector.load %arg2[%c0_1, %c0_2] : memref<128x128xbf16, #tpu.memory_space<vmem>>, vector<128x128xbf16>
    %cst = arith.constant dense<0.000000e+00> : vector<8x128xf32>
    %2 = tpu.matmul %0, %1, %cst {dimension_numbers = #tpu.dot_dimension_numbers<[1], [0], [0], [1], [0, 0, 1, 1], [], []>} : vector<8x128xbf16>, vector<128x128xbf16>, vector<8x128xf32> -> vector<8x128xf32>
    %c0_3 = arith.constant 0 : index
    %c0_4 = arith.constant 0 : index
    %3 = vector.load %arg3[%c0_3, %c0_4] : memref<1x128xf32, #tpu.memory_space<vmem>>, vector<1x128xf32>
    %4 = vector.broadcast %3 : vector<1x128xf32> to vector<8x128xf32>
    %5 = arith.addf %2, %4 : vector<8x128xf32>
    %cst_5 = arith.constant 0.000000e+00 : f32
    %6 = vector.broadcast %cst_5 : f32 to vector<8x128xf32>
    %7 = arith.maximumf %5, %6 : vector<8x128xf32>
    %8 = arith.truncf %7 : vector<8x128xf32> to vector<8x128xbf16>
    %c0_6 = arith.constant 0 : index
    %c0_7 = arith.constant 0 : index
    %9 = vector.load %arg4[%c0_6, %c0_7] : memref<128x128xbf16, #tpu.memory_space<vmem>>, vector<128x128xbf16>
    %cst_8 = arith.constant dense<0.000000e+00> : vector<8x128xf32>
    %10 = tpu.matmul %8, %9, %cst_8 {dimension_numbers = #tpu.dot_dimension_numbers<[1], [0], [0], [1], [0, 0, 1, 1], [], []>} : vector<8x128xbf16>, vector<128x128xbf16>, vector<8x128xf32> -> vector<8x128xf32>
    %c0_9 = arith.constant 0 : index
    %c0_10 = arith.constant 0 : index
    %11 = vector.load %arg5[%c0_9, %c0_10] : memref<1x128xf32, #tpu.memory_space<vmem>>, vector<1x128xf32>
    %12 = vector.broadcast %11 : vector<1x128xf32> to vector<8x128xf32>
    %13 = arith.addf %10, %12 : vector<8x128xf32>
    %cst_11 = arith.constant 0.000000e+00 : f32
    %14 = vector.broadcast %cst_11 : f32 to vector<8x128xf32>
    %15 = arith.maximumf %13, %14 : vector<8x128xf32>
    %16 = arith.truncf %15 : vector<8x128xf32> to vector<8x128xbf16>
    %c0_12 = arith.constant 0 : index
    %c0_13 = arith.constant 0 : index
    %17 = vector.load %arg6[%c0_12, %c0_13] : memref<128x128xbf16, #tpu.memory_space<vmem>>, vector<128x128xbf16>
    %cst_14 = arith.constant dense<0.000000e+00> : vector<8x128xf32>
    %18 = tpu.matmul %16, %17, %cst_14 {dimension_numbers = #tpu.dot_dimension_numbers<[1], [0], [0], [1], [0, 0, 1, 1], [], []>} : vector<8x128xbf16>, vector<128x128xbf16>, vector<8x128xf32> -> vector<8x128xf32>
    %c0_15 = arith.constant 0 : index
    %c0_16 = arith.constant 0 : index
    %19 = vector.load %arg7[%c0_15, %c0_16] : memref<1x128xf32, #tpu.memory_space<vmem>>, vector<1x128xf32>
    %20 = vector.broadcast %19 : vector<1x128xf32> to vector<8x128xf32>
    %21 = arith.addf %18, %20 : vector<8x128xf32>
    %c0_17 = arith.constant 0 : index
    %c0_18 = arith.constant 0 : index
    %22 = vector.load %arg8[%c0_17, %c0_18] : memref<8x128xf32, #tpu.memory_space<vmem>>, vector<8x128xf32>
    tpu.vector_store %arg8[%c0_17, %c0_18], %21 {strides = array<i32>} : memref<8x128xf32, #tpu.memory_space<vmem>>, vector<8x128xf32>,
    return
  }
  func.func @transform_0(%arg0: i32) -> (i32, i32) {
    %c0_i32 = arith.constant 0 : i32
    %c0_i32_0 = arith.constant 0 : i32
    return %arg0, %c0_i32 : i32, i32
  }
  func.func @transform_1(%arg0: i32) -> (i32, i32) {
    %c0_i32 = arith.constant 0 : i32
    %c0_i32_0 = arith.constant 0 : i32
    %c0_i32_1 = arith.constant 0 : i32
    return %c0_i32, %c0_i32_0 : i32, i32
  }
  func.func @transform_2(%arg0: i32) -> (i32, i32) {
    %c0_i32 = arith.constant 0 : i32
    %c0_i32_0 = arith.constant 0 : i32
    %c0_i32_1 = arith.constant 0 : i32
    return %c0_i32, %c0_i32_0 : i32, i32
  }
  func.func @transform_3(%arg0: i32) -> (i32, i32) {
    %c0_i32 = arith.constant 0 : i32
    %c0_i32_0 = arith.constant 0 : i32
    %c0_i32_1 = arith.constant 0 : i32
    return %c0_i32, %c0_i32_0 : i32, i32
  }
  func.func @transform_4(%arg0: i32) -> (i32, i32) {
    %c0_i32 = arith.constant 0 : i32
    %c0_i32_0 = arith.constant 0 : i32
    %c0_i32_1 = arith.constant 0 : i32
    return %c0_i32, %c0_i32_0 : i32, i32
  }
  func.func @transform_5(%arg0: i32) -> (i32, i32) {
    %c0_i32 = arith.constant 0 : i32
    %c0_i32_0 = arith.constant 0 : i32
    %c0_i32_1 = arith.constant 0 : i32
    return %c0_i32, %c0_i32_0 : i32, i32
  }
  func.func @transform_6(%arg0: i32) -> (i32, i32) {
    %c0_i32 = arith.constant 0 : i32
    %c0_i32_0 = arith.constant 0 : i32
    %c0_i32_1 = arith.constant 0 : i32
    return %c0_i32, %c0_i32_0 : i32, i32
  }
  func.func @transform_7(%arg0: i32) -> (i32, i32) {
    %c0_i32 = arith.constant 0 : i32
    %c0_i32_0 = arith.constant 0 : i32
    return %arg0, %c0_i32 : i32, i32
  }
}

module attributes {stable_mosaic.version = 11 : i64} {
  func.func @_fused_mlp_kernel(%arg0: i32, %arg1: memref<8x128xbf16, #tpu.memory_space<vmem>>, %arg2: memref<128x128xbf16, #tpu.memory_space<vmem>>, %arg3: memref<1x128xf32, #tpu.memory_space<vmem>>, %arg4: memref<128x128xbf16, #tpu.memory_space<vmem>>, %arg5: memref<1x128xf32, #tpu.memory_space<vmem>>, %arg6: memref<128x128xbf16, #tpu.memory_space<vmem>>, %arg7: memref<1x128xf32, #tpu.memory_space<vmem>>, %arg8: memref<8x128xf32, #tpu.memory_space<vmem>>) attributes {dimension_semantics = [#tpu.dimension_semantics<arbitrary>], iteration_bounds = array<i64: 1>, scalar_prefetch = 0 : i64, scratch_operands = 0 : i64, tpu.core_type = #tpu.core_type<tc>, window_params = [{transform_indices = @transform_0, window_bounds = array<i64: 8, 128>}, {pipeline_mode = #tpu.pipeline_mode<synchronous>, transform_indices = @transform_1, window_bounds = array<i64: 128, 128>}, {pipeline_mode = #tpu.pipeline_mode<synchronous>, transform_indices = @transform_2, window_bounds = array<i64: 1, 128>}, {pipeline_mode = #tpu.pipeline_mode<synchronous>, transform_indices = @transform_3, window_bounds = array<i64: 128, 128>}, {pipeline_mode = #tpu.pipeline_mode<synchronous>, transform_indices = @transform_4, window_bounds = array<i64: 1, 128>}, {pipeline_mode = #tpu.pipeline_mode<synchronous>, transform_indices = @transform_5, window_bounds = array<i64: 128, 128>}, {pipeline_mode = #tpu.pipeline_mode<synchronous>, transform_indices = @transform_6, window_bounds = array<i64: 1, 128>}, {transform_indices = @transform_7, window_bounds = array<i64: 8, 128>}]} {
    %c0 = arith.constant 0 : index
    %c0_0 = arith.constant 0 : index
    %0 = vector.load %arg1[%c0, %c0_0] : memref<8x128xbf16, #tpu.memory_space<vmem>>, vector<8x128xbf16>
    %c0_1 = arith.constant 0 : index
    %c0_2 = arith.constant 0 : index
    %1 = vector.load %arg2[%c0_1, %c0_2] : memref<128x128xbf16, #tpu.memory_space<vmem>>, vector<128x128xbf16>
    %cst = arith.constant dense<0.000000e+00> : vector<8x128xf32>
    %2 = tpu.matmul %0, %1, %cst {dimension_numbers = #tpu.dot_dimension_numbers<[1], [0], [0], [1], [0, 0, 1, 1], [], []>} : vector<8x128xbf16>, vector<128x128xbf16>, vector<8x128xf32> -> vector<8x128xf32>
    %c0_3 = arith.constant 0 : index
    %c0_4 = arith.constant 0 : index
    %3 = vector.load %arg3[%c0_3, %c0_4] : memref<1x128xf32, #tpu.memory_space<vmem>>, vector<1x128xf32>
    %4 = vector.broadcast %3 : vector<1x128xf32> to vector<8x128xf32>
    %5 = arith.addf %2, %4 : vector<8x128xf32>
    %cst_5 = arith.constant 0.000000e+00 : f32
    %6 = vector.broadcast %cst_5 : f32 to vector<8x128xf32>
    %7 = arith.maximumf %5, %6 : vector<8x128xf32>
    %8 = arith.truncf %7 : vector<8x128xf32> to vector<8x128xbf16>
    %c0_6 = arith.constant 0 : index
    %c0_7 = arith.constant 0 : index
    %9 = vector.load %arg4[%c0_6, %c0_7] : memref<128x128xbf16, #tpu.memory_space<vmem>>, vector<128x128xbf16>
    %cst_8 = arith.constant dense<0.000000e+00> : vector<8x128xf32>
    %10 = tpu.matmul %8, %9, %cst_8 {dimension_numbers = #tpu.dot_dimension_numbers<[1], [0], [0], [1], [0, 0, 1, 1], [], []>} : vector<8x128xbf16>, vector<128x128xbf16>, vector<8x128xf32> -> vector<8x128xf32>
    %c0_9 = arith.constant 0 : index
    %c0_10 = arith.constant 0 : index
    %11 = vector.load %arg5[%c0_9, %c0_10] : memref<1x128xf32, #tpu.memory_space<vmem>>, vector<1x128xf32>
    %12 = vector.broadcast %11 : vector<1x128xf32> to vector<8x128xf32>
    %13 = arith.addf %10, %12 : vector<8x128xf32>
    %cst_11 = arith.constant 0.000000e+00 : f32
    %14 = vector.broadcast %cst_11 : f32 to vector<8x128xf32>
    %15 = arith.maximumf %13, %14 : vector<8x128xf32>
    %16 = arith.truncf %15 : vector<8x128xf32> to vector<8x128xbf16>
    %c0_12 = arith.constant 0 : index
    %c0_13 = arith.constant 0 : index
    %17 = vector.load %arg6[%c0_12, %c0_13] : memref<128x128xbf16, #tpu.memory_space<vmem>>, vector<128x128xbf16>
    %cst_14 = arith.constant dense<0.000000e+00> : vector<8x128xf32>
    %18 = tpu.matmul %16, %17, %cst_14 {dimension_numbers = #tpu.dot_dimension_numbers<[1], [0], [0], [1], [0, 0, 1, 1], [], []>} : vector<8x128xbf16>, vector<128x128xbf16>, vector<8x128xf32> -> vector<8x128xf32>
    %c0_15 = arith.constant 0 : index
    %c0_16 = arith.constant 0 : index
    %19 = vector.load %arg7[%c0_15, %c0_16] : memref<1x128xf32, #tpu.memory_space<vmem>>, vector<1x128xf32>
    %20 = vector.broadcast %19 : vector<1x128xf32> to vector<8x128xf32>
    %21 = arith.addf %18, %20 : vector<8x128xf32>
    %c0_17 = arith.constant 0 : index
    %c0_18 = arith.constant 0 : index
    %22 = vector.load %arg8[%c0_17, %c0_18] : memref<8x128xf32, #tpu.memory_space<vmem>>, vector<8x128xf32>
    tpu.vector_store %arg8[%c0_17, %c0_18], %21 {strides = array<i32>} : memref<8x128xf32, #tpu.memory_space<vmem>>, vector<8x128xf32>,
    return
  }
  func.func @transform_0(%arg0: i32) -> (i32, i32) {
    %c0_i32 = arith.constant 0 : i32
    %c0_i32_0 = arith.constant 0 : i32
    return %arg0, %c0_i32 : i32, i32
  }
  func.func @transform_1(%arg0: i32) -> (i32, i32) {
    %c0_i32 = arith.constant 0 : i32
    %c0_i32_0 = arith.constant 0 : i32
    %c0_i32_1 = arith.constant 0 : i32
    return %c0_i32, %c0_i32_0 : i32, i32
  }
  func.func @transform_2(%arg0: i32) -> (i32, i32) {
    %c0_i32 = arith.constant 0 : i32
    %c0_i32_0 = arith.constant 0 : i32
    %c0_i32_1 = arith.constant 0 : i32
    return %c0_i32, %c0_i32_0 : i32, i32
  }
  func.func @transform_3(%arg0: i32) -> (i32, i32) {
    %c0_i32 = arith.constant 0 : i32
    %c0_i32_0 = arith.constant 0 : i32
    %c0_i32_1 = arith.constant 0 : i32
    return %c0_i32, %c0_i32_0 : i32, i32
  }
  func.func @transform_4(%arg0: i32) -> (i32, i32) {
    %c0_i32 = arith.constant 0 : i32
    %c0_i32_0 = arith.constant 0 : i32
    %c0_i32_1 = arith.constant 0 : i32
    return %c0_i32, %c0_i32_0 : i32, i32
  }
  func.func @transform_5(%arg0: i32) -> (i32, i32) {
    %c0_i32 = arith.constant 0 : i32
    %c0_i32_0 = arith.constant 0 : i32
    %c0_i32_1 = arith.constant 0 : i32
    return %c0_i32, %c0_i32_0 : i32, i32
  }
  func.func @transform_6(%arg0: i32) -> (i32, i32) {
    %c0_i32 = arith.constant 0 : i32
    %c0_i32_0 = arith.constant 0 : i32
    %c0_i32_1 = arith.constant 0 : i32
    return %c0_i32, %c0_i32_0 : i32, i32
  }
  func.func @transform_7(%arg0: i32) -> (i32, i32) {
    %c0_i32 = arith.constant 0 : i32
    %c0_i32_0 = arith.constant 0 : i32
    return %arg0, %c0_i32 : i32, i32
  }
}

</mosaic_0001>

<llo_original>
// kernel: _fused_mlp_forward.1
$region0: #{_fused_mlp_forward.1}
  #allocation0 [shape = 'u32[]', space=smem, size = 0x4, offset = 0x4, fixed_abs, tag = 'smem constant byte address 0x4 - core index']
  #allocation1 [shape = 'u32[144,128]{1,0:T(1,128)}', space=vmem, size = 0x12000, scoped, tag = 'internal scratch']
  %s0 = inlined_call_operand.vmem [shape: bf16[8,128], index: 0, kind: input, shape index: {}]
  %s1 = inlined_call_operand.hbm [shape: bf16[128,128], index: 1, kind: input, shape index: {}]
  %s2 = inlined_call_operand.vmem [shape: f32[1,128], index: 2, kind: input, shape index: {}]
  %s3 = inlined_call_operand.hbm [shape: bf16[128,128], index: 3, kind: input, shape index: {}]
  %s4 = inlined_call_operand.vmem [shape: f32[1,128], index: 4, kind: input, shape index: {}]
  %s5 = inlined_call_operand.hbm [shape: bf16[128,128], index: 5, kind: input, shape index: {}]
  %s6 = inlined_call_operand.vmem [shape: f32[1,128], index: 6, kind: input, shape index: {}]
  %s7 = inlined_call_operand.hbm [shape: f32[8,128], index: 7, kind: output, shape index: {}]
  %s8 = sld [smem:[#allocation0]]
  $region50: #{_fused_mlp_forward.1} parent=0
    _
  %s10 = ssub.s32 1, %s8
  %s11 = scalar_select 0, %s10, %s8
  $region1: #{_fused_mlp_forward.1} parent=0
    #allocation2 [shape = 'u8[32768]{0}', space=vmem, size = 0x8000, scoped, tag = 'input window, operand 1, single buffered']
    #allocation3 [shape = 's32[1]{0}', space=sflag, size = 0x4, scoped, tag = 'scoped memory for _fused_mlp_forward.1']
    #allocation4 [shape = 's32[1]{0}', space=sflag, size = 0x4, scoped, tag = 'scoped memory for _fused_mlp_forward.1']
    #allocation5 [shape = 'u8[32768]{0}', space=vmem, size = 0x8000, scoped, tag = 'input window, operand 3, single buffered']
    #allocation6 [shape = 's32[1]{0}', space=sflag, size = 0x4, scoped, tag = 'scoped memory for _fused_mlp_forward.1']
    #allocation7 [shape = 'u8[32768]{0}', space=vmem, size = 0x8000, scoped, tag = 'input window, operand 5, single buffered']
    #allocation8 [shape = 'u8[4096]{0}', space=vmem, size = 0x1000, scoped, tag = 'output window, operand 0, single buffered']
    %12 = vsyncpa [#allocation3], 0
    %13 = vsyncpa [#allocation6], 0
    %14 = vsyncpa [#allocation4], 0
    // Predicated region
    $region2: #{_fused_mlp_forward.1} parent=1 // pred_check
      _
    $region3: #{_fused_mlp_forward.1} parent=1 // pred_check_branch
      %16 = sbr.rel (0) target = $region5
    $region4: #{_fused_mlp_forward.1} parent=1 // pred_region
      _
    $region5: #{_fused_mlp_forward.1} parent=1 // pred_fallthru
      _
    // Predicated region
    $region6: #{_fused_mlp_forward.1} parent=1 // pred_check
      _
    $region7: #{_fused_mlp_forward.1} parent=1 // pred_check_branch
      %18 = sbr.rel (0) target = $region9
    $region8: #{_fused_mlp_forward.1} parent=1 // pred_region
      %s20 = ssub.s32 1024, 1024
      %21 = vsyncadd [#allocation3], %s20
      %s22 = sshll.u32 [#allocation2], 4
      %s23 = int_to_ptr.vmem [resolvable:$true] %s22
      %28 = dma.hbm_to_vmem [thread:$0]  %s1, 1024, %s23, [#allocation3], 64, 64, 4
    $region9: #{_fused_mlp_forward.1} parent=1 // pred_fallthru
      _
    // Predicated region
    $region10: #{_fused_mlp_forward.1} parent=1 // pred_check
      _
    $region11: #{_fused_mlp_forward.1} parent=1 // pred_check_branch
      %30 = sbr.rel (0) target = $region13
    $region12: #{_fused_mlp_forward.1} parent=1 // pred_region
      _
    $region13: #{_fused_mlp_forward.1} parent=1 // pred_fallthru
      _
    // Predicated region
    $region14: #{_fused_mlp_forward.1} parent=1 // pred_check
      _
    $region15: #{_fused_mlp_forward.1} parent=1 // pred_check_branch
      %32 = sbr.rel (0) target = $region17
    $region16: #{_fused_mlp_forward.1} parent=1 // pred_region
      %s34 = ssub.s32 1024, 1024
      %35 = vsyncadd [#allocation6], %s34
      %s36 = sshll.u32 [#allocation5], 4
      %s37 = int_to_ptr.vmem [resolvable:$true] %s36
      %42 = dma.hbm_to_vmem [thread:$0]  %s3, 1024, %s37, [#allocation6], 64, 64, 4
    $region17: #{_fused_mlp_forward.1} parent=1 // pred_fallthru
      _
    // Predicated region
    $region18: #{_fused_mlp_forward.1} parent=1 // pred_check
      _
    $region19: #{_fused_mlp_forward.1} parent=1 // pred_check_branch
      %44 = sbr.rel (0) target = $region21
    $region20: #{_fused_mlp_forward.1} parent=1 // pred_region
      _
    $region21: #{_fused_mlp_forward.1} parent=1 // pred_fallthru
      _
    // Predicated region
    $region22: #{_fused_mlp_forward.1} parent=1 // pred_check
      _
    $region23: #{_fused_mlp_forward.1} parent=1 // pred_check_branch
      %46 = sbr.rel (0) target = $region25
    $region24: #{_fused_mlp_forward.1} parent=1 // pred_region
      %s48 = ssub.s32 1024, 1024
      %49 = vsyncadd [#allocation6], %s48
      %s50 = sshll.u32 [#allocation7], 4
      %s51 = int_to_ptr.vmem [resolvable:$true] %s50
      %56 = dma.hbm_to_vmem [thread:$0]  %s5, 1024, %s51, [#allocation6], 64, 64, 4
    $region25: #{_fused_mlp_forward.1} parent=1 // pred_fallthru
      _
    // Predicated region
    $region26: #{_fused_mlp_forward.1} parent=1 // pred_check
      _
    $region27: #{_fused_mlp_forward.1} parent=1 // pred_check_branch
      %58 = sbr.rel (0) target = $region29
    $region28: #{_fused_mlp_forward.1} parent=1 // pred_region
      _
    $region29: #{_fused_mlp_forward.1} parent=1 // pred_fallthru
      _
    // Predicated region
    $region30: #{_fused_mlp_forward.1} parent=1 // pred_check
      _
    $region31: #{_fused_mlp_forward.1} parent=1 // pred_check_branch
      %60 = sbr.rel (0) target = $region33
    $region32: #{_fused_mlp_forward.1} parent=1 // pred_region
      %61 = dma.done [#allocation3], 1024
    $region33: #{_fused_mlp_forward.1} parent=1 // pred_fallthru
      _
    // Predicated region
    $region34: #{_fused_mlp_forward.1} parent=1 // pred_check
      _
    $region35: #{_fused_mlp_forward.1} parent=1 // pred_check_branch
      %63 = sbr.rel (0) target = $region37
    $region36: #{_fused_mlp_forward.1} parent=1 // pred_region
      %64 = dma.done [#allocation6], 1024
    $region37: #{_fused_mlp_forward.1} parent=1 // pred_fallthru
      _
    // Predicated region
    $region38: #{_fused_mlp_forward.1} parent=1 // pred_check
      _
    $region39: #{_fused_mlp_forward.1} parent=1 // pred_check_branch
      %66 = sbr.rel (0) target = $region41
    $region40: #{_fused_mlp_forward.1} parent=1 // pred_region
      %67 = dma.done [#allocation6], 1024
    $region41: #{_fused_mlp_forward.1} parent=1 // pred_fallthru
      _
    %v69 = vld [vmem:[%s0] sm:$0xf]
    %v70 = vld [vmem:[#allocation2] sm:$0xf]
    %v71 = vld [vmem:[#allocation2 + $0x4] sm:$0xf]
    %v72 = vld [vmem:[#allocation2 + $0x8] sm:$0xf]
    %v73 = vld [vmem:[#allocation2 + $0xc] sm:$0xf]
    %v74 = vld [vmem:[#allocation2 + $0x10] sm:$0xf]
    %v75 = vld [vmem:[#allocation2 + $0x14] sm:$0xf]
    %v76 = vld [vmem:[#allocation2 + $0x18] sm:$0xf]
    %v77 = vld [vmem:[#allocation2 + $0x1c] sm:$0xf]
    %v78 = vld [vmem:[#allocation2 + $0x20] sm:$0xf]
    %v79 = vld [vmem:[#allocation2 + $0x24] sm:$0xf]
    %v80 = vld [vmem:[#allocation2 + $0x28] sm:$0xf]
    %v81 = vld [vmem:[#allocation2 + $0x2c] sm:$0xf]
    %v82 = vld [vmem:[#allocation2 + $0x30] sm:$0xf]
    %v83 = vld [vmem:[#allocation2 + $0x34] sm:$0xf]
    %v84 = vld [vmem:[#allocation2 + $0x38] sm:$0xf]
    %v85 = vld [vmem:[#allocation2 + $0x3c] sm:$0xf]
    %v86 = vld [vmem:[%s2] sm:$0x1]
    %v88 = vlaneseq
    %v89 = vshrl.u32 %v88, 7
    %v90 = vsub.s32 0, %v89
    %v91 = vrot.slane %v86, %v90
    %v109 = vunpack.c.l.b16 %v70
    %v110 = vunpack.c.l.b16 %v71
    %v111 = vunpack.c.l.b16 %v72
    %v112 = vunpack.c.l.b16 %v73
    %v113 = vunpack.c.l.b16 %v74
    %v114 = vunpack.c.l.b16 %v75
    %v115 = vunpack.c.l.b16 %v76
    %v116 = vunpack.c.l.b16 %v77
    %v117 = vunpack.c.l.b16 %v78
    %v118 = vunpack.c.l.b16 %v79
    %v119 = vunpack.c.l.b16 %v80
    %v120 = vunpack.c.l.b16 %v81
    %v121 = vunpack.c.l.b16 %v82
    %v122 = vunpack.c.l.b16 %v83
    %v123 = vunpack.c.l.b16 %v84
    %v124 = vunpack.c.l.b16 %v85
    %v125 = vpack.c.b16 %v110, %v109
    %v126 = vpack.c.b16 %v112, %v111
    %v127 = vpack.c.b16 %v114, %v113
    %v128 = vpack.c.b16 %v116, %v115
    %v129 = vpack.c.b16 %v118, %v117
    %v130 = vpack.c.b16 %v120, %v119
    %v131 = vpack.c.b16 %v122, %v121
    %v132 = vpack.c.b16 %v124, %v123
    %141 = vmatprep.subr.bf16.mxu0 0
    %142 = vmatpush1.bf16.msra.mxu0 %v125
    %143 = vmatprep.subr.bf16.mxu0 0
    %144 = vmatpush1.bf16.msra.mxu0 %v126
    %145 = vmatprep.subr.bf16.mxu0 0
    %146 = vmatpush1.bf16.msra.mxu0 %v127
    %147 = vmatprep.subr.bf16.mxu0 0
    %148 = vmatpush1.bf16.msra.mxu0 %v128
    %149 = vmatprep.subr.bf16.mxu0 0
    %150 = vmatpush1.bf16.msra.mxu0 %v129
    %151 = vmatprep.subr.bf16.mxu0 0
    %152 = vmatpush1.bf16.msra.mxu0 %v130
    %153 = vmatprep.subr.bf16.mxu0 0
    %154 = vmatpush1.bf16.msra.mxu0 %v131
    %155 = vmatprep.subr.bf16.mxu0 0
    %156 = vmatpush1.bf16.msra.mxu0 %v132
    %157 = vmatprep.subr.bf16.mxu0 0
    %158 = vmatpush1.bf16.msra.mxu0 0
    %159 = vmatprep.subr.bf16.mxu0 0
    %160 = vmatpush1.bf16.msra.mxu0 0
    %161 = vmatprep.subr.bf16.mxu0 0
    %162 = vmatpush1.bf16.msra.mxu0 0
    %163 = vmatprep.subr.bf16.mxu0 0
    %164 = vmatpush1.bf16.msra.mxu0 0
    %165 = vmatprep.subr.bf16.mxu0 0
    %166 = vmatpush1.bf16.msra.mxu0 0
    %167 = vmatprep.subr.bf16.mxu0 0
    %168 = vmatpush1.bf16.msra.mxu0 0
    %169 = vmatprep.subr.bf16.mxu0 0
    %170 = vmatpush1.bf16.msra.mxu0 0
    %171 = vmatprep.subr.bf16.mxu0 0
    %172 = vmatpush1.bf16.msra.mxu0 0
    %173 = vmatprep.mubr.bf16.mxu0 0
    %174 = vmatmul.mubr.bf16.gmra.mrb[0].mxu0 %v69
    %v175 = vpop.f32.mrb[0].mxu0
    %v176 = vadd.f32 %v91, %v175
    %v177 = vpop.f32.mrb[0].mxu0
    %v178 = vpop.f32.mrb[0].mxu0
    %v179 = vpop.f32.mrb[0].mxu0
    %180 = vdwg.mxu0
    %v181 = vmax.f32 %v176, 0.0
    %v182 = vpack.c.bf16 %v181, %v181
    %v183 = vld [vmem:[#allocation5] sm:$0xf]
    %v184 = vld [vmem:[#allocation5 + $0x4] sm:$0xf]
    %v185 = vld [vmem:[#allocation5 + $0x8] sm:$0xf]
    %v186 = vld [vmem:[#allocation5 + $0xc] sm:$0xf]
    %v187 = vld [vmem:[#allocation5 + $0x10] sm:$0xf]
    %v188 = vld [vmem:[#allocation5 + $0x14] sm:$0xf]
    %v189 = vld [vmem:[#allocation5 + $0x18] sm:$0xf]
    %v190 = vld [vmem:[#allocation5 + $0x1c] sm:$0xf]
    %v191 = vld [vmem:[#allocation5 + $0x20] sm:$0xf]
    %v192 = vld [vmem:[#allocation5 + $0x24] sm:$0xf]
    %v193 = vld [vmem:[#allocation5 + $0x28] sm:$0xf]
    %v194 = vld [vmem:[#allocation5 + $0x2c] sm:$0xf]
    %v195 = vld [vmem:[#allocation5 + $0x30] sm:$0xf]
    %v196 = vld [vmem:[#allocation5 + $0x34] sm:$0xf]
    %v197 = vld [vmem:[#allocation5 + $0x38] sm:$0xf]
    %v198 = vld [vmem:[#allocation5 + $0x3c] sm:$0xf]
    %v199 = vld [vmem:[%s4] sm:$0x1]
    %v201 = vlaneseq
    %v202 = vshrl.u32 %v201, 7
    %v203 = vsub.s32 0, %v202
    %v204 = vrot.slane %v199, %v203
    %v222 = vunpack.c.l.b16 %v183
    %v223 = vunpack.c.l.b16 %v184
    %v224 = vunpack.c.l.b16 %v185
    %v225 = vunpack.c.l.b16 %v186
    %v226 = vunpack.c.l.b16 %v187
    %v227 = vunpack.c.l.b16 %v188
    %v228 = vunpack.c.l.b16 %v189
    %v229 = vunpack.c.l.b16 %v190
    %v230 = vunpack.c.l.b16 %v191
    %v231 = vunpack.c.l.b16 %v192
    %v232 = vunpack.c.l.b16 %v193
    %v233 = vunpack.c.l.b16 %v194
    %v234 = vunpack.c.l.b16 %v195
    %v235 = vunpack.c.l.b16 %v196
    %v236 = vunpack.c.l.b16 %v197
    %v237 = vunpack.c.l.b16 %v198
    %v238 = vpack.c.b16 %v223, %v222
    %v239 = vpack.c.b16 %v225, %v224
    %v240 = vpack.c.b16 %v227, %v226
    %v241 = vpack.c.b16 %v229, %v228
    %v242 = vpack.c.b16 %v231, %v230
    %v243 = vpack.c.b16 %v233, %v232
    %v244 = vpack.c.b16 %v235, %v234
    %v245 = vpack.c.b16 %v237, %v236
    %254 = vmatprep.subr.bf16.mxu0 0
    %255 = vmatpush1.bf16.msra.mxu0 %v238
    %256 = vmatprep.subr.bf16.mxu0 0
    %257 = vmatpush1.bf16.msra.mxu0 %v239
    %258 = vmatprep.subr.bf16.mxu0 0
    %259 = vmatpush1.bf16.msra.mxu0 %v240
    %260 = vmatprep.subr.bf16.mxu0 0
    %261 = vmatpush1.bf16.msra.mxu0 %v241
    %262 = vmatprep.subr.bf16.mxu0 0
    %263 = vmatpush1.bf16.msra.mxu0 %v242
    %264 = vmatprep.subr.bf16.mxu0 0
    %265 = vmatpush1.bf16.msra.mxu0 %v243
    %266 = vmatprep.subr.bf16.mxu0 0
    %267 = vmatpush1.bf16.msra.mxu0 %v244
    %268 = vmatprep.subr.bf16.mxu0 0
    %269 = vmatpush1.bf16.msra.mxu0 %v245
    %270 = vmatprep.subr.bf16.mxu0 0
    %271 = vmatpush1.bf16.msra.mxu0 0
    %272 = vmatprep.subr.bf16.mxu0 0
    %273 = vmatpush1.bf16.msra.mxu0 0
    %274 = vmatprep.subr.bf16.mxu0 0
    %275 = vmatpush1.bf16.msra.mxu0 0
    %276 = vmatprep.subr.bf16.mxu0 0
    %277 = vmatpush1.bf16.msra.mxu0 0
    %278 = vmatprep.subr.bf16.mxu0 0
    %279 = vmatpush1.bf16.msra.mxu0 0
    %280 = vmatprep.subr.bf16.mxu0 0
    %281 = vmatpush1.bf16.msra.mxu0 0
    %282 = vmatprep.subr.bf16.mxu0 0
    %283 = vmatpush1.bf16.msra.mxu0 0
    %284 = vmatprep.subr.bf16.mxu0 0
    %285 = vmatpush1.bf16.msra.mxu0 0
    %286 = vmatprep.mubr.bf16.mxu0 0
    %287 = vmatmul.mubr.bf16.gmra.mrb[0].mxu0 %v182
    %v288 = vpop.f32.mrb[0].mxu0
    %v289 = vadd.f32 %v204, %v288
    %v290 = vpop.f32.mrb[0].mxu0
    %v291 = vpop.f32.mrb[0].mxu0
    %v292 = vpop.f32.mrb[0].mxu0
    %293 = vdwg.mxu0
    %v294 = vmax.f32 %v289, 0.0
    %v295 = vpack.c.bf16 %v294, %v294
    %v296 = vld [vmem:[#allocation7] sm:$0xf]
    %v297 = vld [vmem:[#allocation7 + $0x4] sm:$0xf]
    %v298 = vld [vmem:[#allocation7 + $0x8] sm:$0xf]
    %v299 = vld [vmem:[#allocation7 + $0xc] sm:$0xf]
    %v300 = vld [vmem:[#allocation7 + $0x10] sm:$0xf]
    %v301 = vld [vmem:[#allocation7 + $0x14] sm:$0xf]
    %v302 = vld [vmem:[#allocation7 + $0x18] sm:$0xf]
    %v303 = vld [vmem:[#allocation7 + $0x1c] sm:$0xf]
    %v304 = vld [vmem:[#allocation7 + $0x20] sm:$0xf]
    %v305 = vld [vmem:[#allocation7 + $0x24] sm:$0xf]
    %v306 = vld [vmem:[#allocation7 + $0x28] sm:$0xf]
    %v307 = vld [vmem:[#allocation7 + $0x2c] sm:$0xf]
    %v308 = vld [vmem:[#allocation7 + $0x30] sm:$0xf]
    %v309 = vld [vmem:[#allocation7 + $0x34] sm:$0xf]
    %v310 = vld [vmem:[#allocation7 + $0x38] sm:$0xf]
    %v311 = vld [vmem:[#allocation7 + $0x3c] sm:$0xf]
    %v312 = vld [vmem:[%s6] sm:$0x1]
    %v314 = vlaneseq
    %v315 = vshrl.u32 %v314, 7
    %v316 = vsub.s32 0, %v315
    %v317 = vrot.slane %v312, %v316
    %v335 = vunpack.c.l.b16 %v296
    %v336 = vunpack.c.l.b16 %v297
    %v337 = vunpack.c.l.b16 %v298
    %v338 = vunpack.c.l.b16 %v299
    %v339 = vunpack.c.l.b16 %v300
    %v340 = vunpack.c.l.b16 %v301
    %v341 = vunpack.c.l.b16 %v302
    %v342 = vunpack.c.l.b16 %v303
    %v343 = vunpack.c.l.b16 %v304
    %v344 = vunpack.c.l.b16 %v305
    %v345 = vunpack.c.l.b16 %v306
    %v346 = vunpack.c.l.b16 %v307
    %v347 = vunpack.c.l.b16 %v308
    %v348 = vunpack.c.l.b16 %v309
    %v349 = vunpack.c.l.b16 %v310
    %v350 = vunpack.c.l.b16 %v311
    %v351 = vpack.c.b16 %v336, %v335
    %v352 = vpack.c.b16 %v338, %v337
    %v353 = vpack.c.b16 %v340, %v339
    %v354 = vpack.c.b16 %v342, %v341
    %v355 = vpack.c.b16 %v344, %v343
    %v356 = vpack.c.b16 %v346, %v345
    %v357 = vpack.c.b16 %v348, %v347
    %v358 = vpack.c.b16 %v350, %v349
    %367 = vmatprep.subr.bf16.mxu0 0
    %368 = vmatpush1.bf16.msra.mxu0 %v351
    %369 = vmatprep.subr.bf16.mxu0 0
    %370 = vmatpush1.bf16.msra.mxu0 %v352
    %371 = vmatprep.subr.bf16.mxu0 0
    %372 = vmatpush1.bf16.msra.mxu0 %v353
    %373 = vmatprep.subr.bf16.mxu0 0
    %374 = vmatpush1.bf16.msra.mxu0 %v354
    %375 = vmatprep.subr.bf16.mxu0 0
    %376 = vmatpush1.bf16.msra.mxu0 %v355
    %377 = vmatprep.subr.bf16.mxu0 0
    %378 = vmatpush1.bf16.msra.mxu0 %v356
    %379 = vmatprep.subr.bf16.mxu0 0
    %380 = vmatpush1.bf16.msra.mxu0 %v357
    %381 = vmatprep.subr.bf16.mxu0 0
    %382 = vmatpush1.bf16.msra.mxu0 %v358
    %383 = vmatprep.subr.bf16.mxu0 0
    %384 = vmatpush1.bf16.msra.mxu0 0
    %385 = vmatprep.subr.bf16.mxu0 0
    %386 = vmatpush1.bf16.msra.mxu0 0
    %387 = vmatprep.subr.bf16.mxu0 0
    %388 = vmatpush1.bf16.msra.mxu0 0
    %389 = vmatprep.subr.bf16.mxu0 0
    %390 = vmatpush1.bf16.msra.mxu0 0
    %391 = vmatprep.subr.bf16.mxu0 0
    %392 = vmatpush1.bf16.msra.mxu0 0
    %393 = vmatprep.subr.bf16.mxu0 0
    %394 = vmatpush1.bf16.msra.mxu0 0
    %395 = vmatprep.subr.bf16.mxu0 0
    %396 = vmatpush1.bf16.msra.mxu0 0
    %397 = vmatprep.subr.bf16.mxu0 0
    %398 = vmatpush1.bf16.msra.mxu0 0
    %399 = vmatprep.mubr.bf16.mxu0 0
    %400 = vmatmul.mubr.bf16.gmra.mrb[0].mxu0 %v295
    %v401 = vpop.f32.mrb[0].mxu0
    %v402 = vadd.f32 %v317, %v401
    %v403 = vpop.f32.mrb[0].mxu0
    %v404 = vpop.f32.mrb[0].mxu0
    %v405 = vpop.f32.mrb[0].mxu0
    %406 = vdwg.mxu0
    %407 = vst [vmem:[#allocation8] sm:$0xff] %v402
    // Predicated region
    $region42: #{_fused_mlp_forward.1} parent=1 // pred_check
      _
    $region43: #{_fused_mlp_forward.1} parent=1 // pred_check_branch
      %409 = sbr.rel (0) target = $region45
    $region44: #{_fused_mlp_forward.1} parent=1 // pred_region
      %s411 = ssub.s32 128, 128
      %412 = vsyncadd [#allocation4], %s411
      %s414 = sshll.u32 [#allocation8], 4
      %s415 = int_to_ptr.vmem [resolvable:$true] %s414
      %417 = dma.vmem_to_hbm [thread:$0]  %s415, 128, %s7, [#allocation4]
    $region45: #{_fused_mlp_forward.1} parent=1 // pred_fallthru
      _
    // Predicated region
    $region46: #{_fused_mlp_forward.1} parent=1 // pred_check
      _
    $region47: #{_fused_mlp_forward.1} parent=1 // pred_check_branch
      %419 = sbr.rel (0) target = $region49
    $region48: #{_fused_mlp_forward.1} parent=1 // pred_region
      %420 = dma.done [#allocation4], 128
    $region49: #{_fused_mlp_forward.1} parent=1 // pred_fallthru
      _
    %421 = vsyncpa [#allocation3], 1
    %422 = vsyncpa [#allocation6], 1
    %423 = vsyncpa [#allocation4], 1

// kernel: _fused_mlp_forward.1
$region0: #{_fused_mlp_forward.1}
  #allocation0 [shape = 'u32[]', space=smem, size = 0x4, offset = 0x4, fixed_abs, tag = 'smem constant byte address 0x4 - core index']
  #allocation1 [shape = 'u32[144,128]{1,0:T(1,128)}', space=vmem, size = 0x12000, scoped, tag = 'internal scratch']
  %s0 = inlined_call_operand.vmem [shape: bf16[8,128], index: 0, kind: input, shape index: {}]
  %s1 = inlined_call_operand.hbm [shape: bf16[128,128], index: 1, kind: input, shape index: {}]
  %s2 = inlined_call_operand.vmem [shape: f32[1,128], index: 2, kind: input, shape index: {}]
  %s3 = inlined_call_operand.hbm [shape: bf16[128,128], index: 3, kind: input, shape index: {}]
  %s4 = inlined_call_operand.vmem [shape: f32[1,128], index: 4, kind: input, shape index: {}]
  %s5 = inlined_call_operand.hbm [shape: bf16[128,128], index: 5, kind: input, shape index: {}]
  %s6 = inlined_call_operand.vmem [shape: f32[1,128], index: 6, kind: input, shape index: {}]
  %s7 = inlined_call_operand.hbm [shape: f32[8,128], index: 7, kind: output, shape index: {}]
  %s8 = sld [smem:[#allocation0]]
  $region50: #{_fused_mlp_forward.1} parent=0
    _
  %s10 = ssub.s32 1, %s8
  %s11 = scalar_select 0, %s10, %s8
  $region1: #{_fused_mlp_forward.1} parent=0
    #allocation2 [shape = 'u8[32768]{0}', space=vmem, size = 0x8000, scoped, tag = 'input window, operand 1, single buffered']
    #allocation3 [shape = 's32[1]{0}', space=sflag, size = 0x4, scoped, tag = 'scoped memory for _fused_mlp_forward.1']
    #allocation4 [shape = 's32[1]{0}', space=sflag, size = 0x4, scoped, tag = 'scoped memory for _fused_mlp_forward.1']
    #allocation5 [shape = 'u8[32768]{0}', space=vmem, size = 0x8000, scoped, tag = 'input window, operand 3, single buffered']
    #allocation6 [shape = 's32[1]{0}', space=sflag, size = 0x4, scoped, tag = 'scoped memory for _fused_mlp_forward.1']
    #allocation7 [shape = 'u8[32768]{0}', space=vmem, size = 0x8000, scoped, tag = 'input window, operand 5, single buffered']
    #allocation8 [shape = 'u8[4096]{0}', space=vmem, size = 0x1000, scoped, tag = 'output window, operand 0, single buffered']
    %12 = vsyncpa [#allocation3], 0
    %13 = vsyncpa [#allocation6], 0
    %14 = vsyncpa [#allocation4], 0
    // Predicated region
    $region2: #{_fused_mlp_forward.1} parent=1 // pred_check
      _
    $region3: #{_fused_mlp_forward.1} parent=1 // pred_check_branch
      %16 = sbr.rel (0) target = $region5
    $region4: #{_fused_mlp_forward.1} parent=1 // pred_region
      _
    $region5: #{_fused_mlp_forward.1} parent=1 // pred_fallthru
      _
    // Predicated region
    $region6: #{_fused_mlp_forward.1} parent=1 // pred_check
      _
    $region7: #{_fused_mlp_forward.1} parent=1 // pred_check_branch
      %18 = sbr.rel (0) target = $region9
    $region8: #{_fused_mlp_forward.1} parent=1 // pred_region
      %s20 = ssub.s32 1024, 1024
      %21 = vsyncadd [#allocation3], %s20
      %s22 = sshll.u32 [#allocation2], 4
      %s23 = int_to_ptr.vmem [resolvable:$true] %s22
      %28 = dma.hbm_to_vmem [thread:$0]  %s1, 1024, %s23, [#allocation3], 64, 64, 4
    $region9: #{_fused_mlp_forward.1} parent=1 // pred_fallthru
      _
    // Predicated region
    $region10: #{_fused_mlp_forward.1} parent=1 // pred_check
      _
    $region11: #{_fused_mlp_forward.1} parent=1 // pred_check_branch
      %30 = sbr.rel (0) target = $region13
    $region12: #{_fused_mlp_forward.1} parent=1 // pred_region
      _
    $region13: #{_fused_mlp_forward.1} parent=1 // pred_fallthru
      _
    // Predicated region
    $region14: #{_fused_mlp_forward.1} parent=1 // pred_check
      _
    $region15: #{_fused_mlp_forward.1} parent=1 // pred_check_branch
      %32 = sbr.rel (0) target = $region17
    $region16: #{_fused_mlp_forward.1} parent=1 // pred_region
      %s34 = ssub.s32 1024, 1024
      %35 = vsyncadd [#allocation6], %s34
      %s36 = sshll.u32 [#allocation5], 4
      %s37 = int_to_ptr.vmem [resolvable:$true] %s36
      %42 = dma.hbm_to_vmem [thread:$0]  %s3, 1024, %s37, [#allocation6], 64, 64, 4
    $region17: #{_fused_mlp_forward.1} parent=1 // pred_fallthru
      _
    // Predicated region
    $region18: #{_fused_mlp_forward.1} parent=1 // pred_check
      _
    $region19: #{_fused_mlp_forward.1} parent=1 // pred_check_branch
      %44 = sbr.rel (0) target = $region21
    $region20: #{_fused_mlp_forward.1} parent=1 // pred_region
      _
    $region21: #{_fused_mlp_forward.1} parent=1 // pred_fallthru
      _
    // Predicated region
    $region22: #{_fused_mlp_forward.1} parent=1 // pred_check
      _
    $region23: #{_fused_mlp_forward.1} parent=1 // pred_check_branch
      %46 = sbr.rel (0) target = $region25
    $region24: #{_fused_mlp_forward.1} parent=1 // pred_region
      %s48 = ssub.s32 1024, 1024
      %49 = vsyncadd [#allocation6], %s48
      %s50 = sshll.u32 [#allocation7], 4
      %s51 = int_to_ptr.vmem [resolvable:$true] %s50
      %56 = dma.hbm_to_vmem [thread:$0]  %s5, 1024, %s51, [#allocation6], 64, 64, 4
    $region25: #{_fused_mlp_forward.1} parent=1 // pred_fallthru
      _
    // Predicated region
    $region26: #{_fused_mlp_forward.1} parent=1 // pred_check
      _
    $region27: #{_fused_mlp_forward.1} parent=1 // pred_check_branch
      %58 = sbr.rel (0) target = $region29
    $region28: #{_fused_mlp_forward.1} parent=1 // pred_region
      _
    $region29: #{_fused_mlp_forward.1} parent=1 // pred_fallthru
      _
    // Predicated region
    $region30: #{_fused_mlp_forward.1} parent=1 // pred_check
      _
    $region31: #{_fused_mlp_forward.1} parent=1 // pred_check_branch
      %60 = sbr.rel (0) target = $region33
    $region32: #{_fused_mlp_forward.1} parent=1 // pred_region
      %61 = dma.done [#allocation3], 1024
    $region33: #{_fused_mlp_forward.1} parent=1 // pred_fallthru
      _
    // Predicated region
    $region34: #{_fused_mlp_forward.1} parent=1 // pred_check
      _
    $region35: #{_fused_mlp_forward.1} parent=1 // pred_check_branch
      %63 = sbr.rel (0) target = $region37
    $region36: #{_fused_mlp_forward.1} parent=1 // pred_region
      %64 = dma.done [#allocation6], 1024
    $region37: #{_fused_mlp_forward.1} parent=1 // pred_fallthru
      _
    // Predicated region
    $region38: #{_fused_mlp_forward.1} parent=1 // pred_check
      _
    $region39: #{_fused_mlp_forward.1} parent=1 // pred_check_branch
      %66 = sbr.rel (0) target = $region41
    $region40: #{_fused_mlp_forward.1} parent=1 // pred_region
      %67 = dma.done [#allocation6], 1024
    $region41: #{_fused_mlp_forward.1} parent=1 // pred_fallthru
      _
    %v69 = vld [vmem:[%s0] sm:$0xf]
    %v70 = vld [vmem:[#allocation2] sm:$0xf]
    %v71 = vld [vmem:[#allocation2 + $0x4] sm:$0xf]
    %v72 = vld [vmem:[#allocation2 + $0x8] sm:$0xf]
    %v73 = vld [vmem:[#allocation2 + $0xc] sm:$0xf]
    %v74 = vld [vmem:[#allocation2 + $0x10] sm:$0xf]
    %v75 = vld [vmem:[#allocation2 + $0x14] sm:$0xf]
    %v76 = vld [vmem:[#allocation2 + $0x18] sm:$0xf]
    %v77 = vld [vmem:[#allocation2 + $0x1c] sm:$0xf]
    %v78 = vld [vmem:[#allocation2 + $0x20] sm:$0xf]
    %v79 = vld [vmem:[#allocation2 + $0x24] sm:$0xf]
    %v80 = vld [vmem:[#allocation2 + $0x28] sm:$0xf]
    %v81 = vld [vmem:[#allocation2 + $0x2c] sm:$0xf]
    %v82 = vld [vmem:[#allocation2 + $0x30] sm:$0xf]
    %v83 = vld [vmem:[#allocation2 + $0x34] sm:$0xf]
    %v84 = vld [vmem:[#allocation2 + $0x38] sm:$0xf]
    %v85 = vld [vmem:[#allocation2 + $0x3c] sm:$0xf]
    %v86 = vld [vmem:[%s2] sm:$0x1]
    %v88 = vlaneseq
    %v89 = vshrl.u32 %v88, 7
    %v90 = vsub.s32 0, %v89
    %v91 = vrot.slane %v86, %v90
    %v109 = vunpack.c.l.b16 %v70
    %v110 = vunpack.c.l.b16 %v71
    %v111 = vunpack.c.l.b16 %v72
    %v112 = vunpack.c.l.b16 %v73
    %v113 = vunpack.c.l.b16 %v74
    %v114 = vunpack.c.l.b16 %v75
    %v115 = vunpack.c.l.b16 %v76
    %v116 = vunpack.c.l.b16 %v77
    %v117 = vunpack.c.l.b16 %v78
    %v118 = vunpack.c.l.b16 %v79
    %v119 = vunpack.c.l.b16 %v80
    %v120 = vunpack.c.l.b16 %v81
    %v121 = vunpack.c.l.b16 %v82
    %v122 = vunpack.c.l.b16 %v83
    %v123 = vunpack.c.l.b16 %v84
    %v124 = vunpack.c.l.b16 %v85
    %v125 = vpack.c.b16 %v110, %v109
    %v126 = vpack.c.b16 %v112, %v111
    %v127 = vpack.c.b16 %v114, %v113
    %v128 = vpack.c.b16 %v116, %v115
    %v129 = vpack.c.b16 %v118, %v117
    %v130 = vpack.c.b16 %v120, %v119
    %v131 = vpack.c.b16 %v122, %v121
    %v132 = vpack.c.b16 %v124, %v123
    %141 = vmatprep.subr.bf16.mxu0 0
    %142 = vmatpush1.bf16.msra.mxu0 %v125
    %143 = vmatprep.subr.bf16.mxu0 0
    %144 = vmatpush1.bf16.msra.mxu0 %v126
    %145 = vmatprep.subr.bf16.mxu0 0
    %146 = vmatpush1.bf16.msra.mxu0 %v127
    %147 = vmatprep.subr.bf16.mxu0 0
    %148 = vmatpush1.bf16.msra.mxu0 %v128
    %149 = vmatprep.subr.bf16.mxu0 0
    %150 = vmatpush1.bf16.msra.mxu0 %v129
    %151 = vmatprep.subr.bf16.mxu0 0
    %152 = vmatpush1.bf16.msra.mxu0 %v130
    %153 = vmatprep.subr.bf16.mxu0 0
    %154 = vmatpush1.bf16.msra.mxu0 %v131
    %155 = vmatprep.subr.bf16.mxu0 0
    %156 = vmatpush1.bf16.msra.mxu0 %v132
    %157 = vmatprep.subr.bf16.mxu0 0
    %158 = vmatpush1.bf16.msra.mxu0 0
    %159 = vmatprep.subr.bf16.mxu0 0
    %160 = vmatpush1.bf16.msra.mxu0 0
    %161 = vmatprep.subr.bf16.mxu0 0
    %162 = vmatpush1.bf16.msra.mxu0 0
    %163 = vmatprep.subr.bf16.mxu0 0
    %164 = vmatpush1.bf16.msra.mxu0 0
    %165 = vmatprep.subr.bf16.mxu0 0
    %166 = vmatpush1.bf16.msra.mxu0 0
    %167 = vmatprep.subr.bf16.mxu0 0
    %168 = vmatpush1.bf16.msra.mxu0 0
    %169 = vmatprep.subr.bf16.mxu0 0
    %170 = vmatpush1.bf16.msra.mxu0 0
    %171 = vmatprep.subr.bf16.mxu0 0
    %172 = vmatpush1.bf16.msra.mxu0 0
    %173 = vmatprep.mubr.bf16.mxu0 0
    %174 = vmatmul.mubr.bf16.gmra.mrb[0].mxu0 %v69
    %v175 = vpop.f32.mrb[0].mxu0
    %v176 = vadd.f32 %v91, %v175
    %v177 = vpop.f32.mrb[0].mxu0
    %v178 = vpop.f32.mrb[0].mxu0
    %v179 = vpop.f32.mrb[0].mxu0
    %180 = vdwg.mxu0
    %v181 = vmax.f32 %v176, 0.0
    %v182 = vpack.c.bf16 %v181, %v181
    %v183 = vld [vmem:[#allocation5] sm:$0xf]
    %v184 = vld [vmem:[#allocation5 + $0x4] sm:$0xf]
    %v185 = vld [vmem:[#allocation5 + $0x8] sm:$0xf]
    %v186 = vld [vmem:[#allocation5 + $0xc] sm:$0xf]
    %v187 = vld [vmem:[#allocation5 + $0x10] sm:$0xf]
    %v188 = vld [vmem:[#allocation5 + $0x14] sm:$0xf]
    %v189 = vld [vmem:[#allocation5 + $0x18] sm:$0xf]
    %v190 = vld [vmem:[#allocation5 + $0x1c] sm:$0xf]
    %v191 = vld [vmem:[#allocation5 + $0x20] sm:$0xf]
    %v192 = vld [vmem:[#allocation5 + $0x24] sm:$0xf]
    %v193 = vld [vmem:[#allocation5 + $0x28] sm:$0xf]
    %v194 = vld [vmem:[#allocation5 + $0x2c] sm:$0xf]
    %v195 = vld [vmem:[#allocation5 + $0x30] sm:$0xf]
    %v196 = vld [vmem:[#allocation5 + $0x34] sm:$0xf]
    %v197 = vld [vmem:[#allocation5 + $0x38] sm:$0xf]
    %v198 = vld [vmem:[#allocation5 + $0x3c] sm:$0xf]
    %v199 = vld [vmem:[%s4] sm:$0x1]
    %v201 = vlaneseq
    %v202 = vshrl.u32 %v201, 7
    %v203 = vsub.s32 0, %v202
    %v204 = vrot.slane %v199, %v203
    %v222 = vunpack.c.l.b16 %v183
    %v223 = vunpack.c.l.b16 %v184
    %v224 = vunpack.c.l.b16 %v185
    %v225 = vunpack.c.l.b16 %v186
    %v226 = vunpack.c.l.b16 %v187
    %v227 = vunpack.c.l.b16 %v188
    %v228 = vunpack.c.l.b16 %v189
    %v229 = vunpack.c.l.b16 %v190
    %v230 = vunpack.c.l.b16 %v191
    %v231 = vunpack.c.l.b16 %v192
    %v232 = vunpack.c.l.b16 %v193
    %v233 = vunpack.c.l.b16 %v194
    %v234 = vunpack.c.l.b16 %v195
    %v235 = vunpack.c.l.b16 %v196
    %v236 = vunpack.c.l.b16 %v197
    %v237 = vunpack.c.l.b16 %v198
    %v238 = vpack.c.b16 %v223, %v222
    %v239 = vpack.c.b16 %v225, %v224
    %v240 = vpack.c.b16 %v227, %v226
    %v241 = vpack.c.b16 %v229, %v228
    %v242 = vpack.c.b16 %v231, %v230
    %v243 = vpack.c.b16 %v233, %v232
    %v244 = vpack.c.b16 %v235, %v234
    %v245 = vpack.c.b16 %v237, %v236
    %254 = vmatprep.subr.bf16.mxu0 0
    %255 = vmatpush1.bf16.msra.mxu0 %v238
    %256 = vmatprep.subr.bf16.mxu0 0
    %257 = vmatpush1.bf16.msra.mxu0 %v239
    %258 = vmatprep.subr.bf16.mxu0 0
    %259 = vmatpush1.bf16.msra.mxu0 %v240
    %260 = vmatprep.subr.bf16.mxu0 0
    %261 = vmatpush1.bf16.msra.mxu0 %v241
    %262 = vmatprep.subr.bf16.mxu0 0
    %263 = vmatpush1.bf16.msra.mxu0 %v242
    %264 = vmatprep.subr.bf16.mxu0 0
    %265 = vmatpush1.bf16.msra.mxu0 %v243
    %266 = vmatprep.subr.bf16.mxu0 0
    %267 = vmatpush1.bf16.msra.mxu0 %v244
    %268 = vmatprep.subr.bf16.mxu0 0
    %269 = vmatpush1.bf16.msra.mxu0 %v245
    %270 = vmatprep.subr.bf16.mxu0 0
    %271 = vmatpush1.bf16.msra.mxu0 0
    %272 = vmatprep.subr.bf16.mxu0 0
    %273 = vmatpush1.bf16.msra.mxu0 0
    %274 = vmatprep.subr.bf16.mxu0 0
    %275 = vmatpush1.bf16.msra.mxu0 0
    %276 = vmatprep.subr.bf16.mxu0 0
    %277 = vmatpush1.bf16.msra.mxu0 0
    %278 = vmatprep.subr.bf16.mxu0 0
    %279 = vmatpush1.bf16.msra.mxu0 0
    %280 = vmatprep.subr.bf16.mxu0 0
    %281 = vmatpush1.bf16.msra.mxu0 0
    %282 = vmatprep.subr.bf16.mxu0 0
    %283 = vmatpush1.bf16.msra.mxu0 0
    %284 = vmatprep.subr.bf16.mxu0 0
    %285 = vmatpush1.bf16.msra.mxu0 0
    %286 = vmatprep.mubr.bf16.mxu0 0
    %287 = vmatmul.mubr.bf16.gmra.mrb[0].mxu0 %v182
    %v288 = vpop.f32.mrb[0].mxu0
    %v289 = vadd.f32 %v204, %v288
    %v290 = vpop.f32.mrb[0].mxu0
    %v291 = vpop.f32.mrb[0].mxu0
    %v292 = vpop.f32.mrb[0].mxu0
    %293 = vdwg.mxu0
    %v294 = vmax.f32 %v289, 0.0
    %v295 = vpack.c.bf16 %v294, %v294
    %v296 = vld [vmem:[#allocation7] sm:$0xf]
    %v297 = vld [vmem:[#allocation7 + $0x4] sm:$0xf]
    %v298 = vld [vmem:[#allocation7 + $0x8] sm:$0xf]
    %v299 = vld [vmem:[#allocation7 + $0xc] sm:$0xf]
    %v300 = vld [vmem:[#allocation7 + $0x10] sm:$0xf]
    %v301 = vld [vmem:[#allocation7 + $0x14] sm:$0xf]
    %v302 = vld [vmem:[#allocation7 + $0x18] sm:$0xf]
    %v303 = vld [vmem:[#allocation7 + $0x1c] sm:$0xf]
    %v304 = vld [vmem:[#allocation7 + $0x20] sm:$0xf]
    %v305 = vld [vmem:[#allocation7 + $0x24] sm:$0xf]
    %v306 = vld [vmem:[#allocation7 + $0x28] sm:$0xf]
    %v307 = vld [vmem:[#allocation7 + $0x2c] sm:$0xf]
    %v308 = vld [vmem:[#allocation7 + $0x30] sm:$0xf]
    %v309 = vld [vmem:[#allocation7 + $0x34] sm:$0xf]
    %v310 = vld [vmem:[#allocation7 + $0x38] sm:$0xf]
    %v311 = vld [vmem:[#allocation7 + $0x3c] sm:$0xf]
    %v312 = vld [vmem:[%s6] sm:$0x1]
    %v314 = vlaneseq
    %v315 = vshrl.u32 %v314, 7
    %v316 = vsub.s32 0, %v315
    %v317 = vrot.slane %v312, %v316
    %v335 = vunpack.c.l.b16 %v296
    %v336 = vunpack.c.l.b16 %v297
    %v337 = vunpack.c.l.b16 %v298
    %v338 = vunpack.c.l.b16 %v299
    %v339 = vunpack.c.l.b16 %v300
    %v340 = vunpack.c.l.b16 %v301
    %v341 = vunpack.c.l.b16 %v302
    %v342 = vunpack.c.l.b16 %v303
    %v343 = vunpack.c.l.b16 %v304
    %v344 = vunpack.c.l.b16 %v305
    %v345 = vunpack.c.l.b16 %v306
    %v346 = vunpack.c.l.b16 %v307
    %v347 = vunpack.c.l.b16 %v308
    %v348 = vunpack.c.l.b16 %v309
    %v349 = vunpack.c.l.b16 %v310
    %v350 = vunpack.c.l.b16 %v311
    %v351 = vpack.c.b16 %v336, %v335
    %v352 = vpack.c.b16 %v338, %v337
    %v353 = vpack.c.b16 %v340, %v339
    %v354 = vpack.c.b16 %v342, %v341
    %v355 = vpack.c.b16 %v344, %v343
    %v356 = vpack.c.b16 %v346, %v345
    %v357 = vpack.c.b16 %v348, %v347
    %v358 = vpack.c.b16 %v350, %v349
    %367 = vmatprep.subr.bf16.mxu0 0
    %368 = vmatpush1.bf16.msra.mxu0 %v351
    %369 = vmatprep.subr.bf16.mxu0 0
    %370 = vmatpush1.bf16.msra.mxu0 %v352
    %371 = vmatprep.subr.bf16.mxu0 0
    %372 = vmatpush1.bf16.msra.mxu0 %v353
    %373 = vmatprep.subr.bf16.mxu0 0
    %374 = vmatpush1.bf16.msra.mxu0 %v354
    %375 = vmatprep.subr.bf16.mxu0 0
    %376 = vmatpush1.bf16.msra.mxu0 %v355
    %377 = vmatprep.subr.bf16.mxu0 0
    %378 = vmatpush1.bf16.msra.mxu0 %v356
    %379 = vmatprep.subr.bf16.mxu0 0
    %380 = vmatpush1.bf16.msra.mxu0 %v357
    %381 = vmatprep.subr.bf16.mxu0 0
    %382 = vmatpush1.bf16.msra.mxu0 %v358
    %383 = vmatprep.subr.bf16.mxu0 0
    %384 = vmatpush1.bf16.msra.mxu0 0
    %385 = vmatprep.subr.bf16.mxu0 0
    %386 = vmatpush1.bf16.msra.mxu0 0
    %387 = vmatprep.subr.bf16.mxu0 0
    %388 = vmatpush1.bf16.msra.mxu0 0
    %389 = vmatprep.subr.bf16.mxu0 0
    %390 = vmatpush1.bf16.msra.mxu0 0
    %391 = vmatprep.subr.bf16.mxu0 0
    %392 = vmatpush1.bf16.msra.mxu0 0
    %393 = vmatprep.subr.bf16.mxu0 0
    %394 = vmatpush1.bf16.msra.mxu0 0
    %395 = vmatprep.subr.bf16.mxu0 0
    %396 = vmatpush1.bf16.msra.mxu0 0
    %397 = vmatprep.subr.bf16.mxu0 0
    %398 = vmatpush1.bf16.msra.mxu0 0
    %399 = vmatprep.mubr.bf16.mxu0 0
    %400 = vmatmul.mubr.bf16.gmra.mrb[0].mxu0 %v295
    %v401 = vpop.f32.mrb[0].mxu0
    %v402 = vadd.f32 %v317, %v401
    %v403 = vpop.f32.mrb[0].mxu0
    %v404 = vpop.f32.mrb[0].mxu0
    %v405 = vpop.f32.mrb[0].mxu0
    %406 = vdwg.mxu0
    %407 = vst [vmem:[#allocation8] sm:$0xff] %v402
    // Predicated region
    $region42: #{_fused_mlp_forward.1} parent=1 // pred_check
      _
    $region43: #{_fused_mlp_forward.1} parent=1 // pred_check_branch
      %409 = sbr.rel (0) target = $region45
    $region44: #{_fused_mlp_forward.1} parent=1 // pred_region
      %s411 = ssub.s32 128, 128
      %412 = vsyncadd [#allocation4], %s411
      %s414 = sshll.u32 [#allocation8], 4
      %s415 = int_to_ptr.vmem [resolvable:$true] %s414
      %417 = dma.vmem_to_hbm [thread:$0]  %s415, 128, %s7, [#allocation4]
    $region45: #{_fused_mlp_forward.1} parent=1 // pred_fallthru
      _
    // Predicated region
    $region46: #{_fused_mlp_forward.1} parent=1 // pred_check
      _
    $region47: #{_fused_mlp_forward.1} parent=1 // pred_check_branch
      %419 = sbr.rel (0) target = $region49
    $region48: #{_fused_mlp_forward.1} parent=1 // pred_region
      %420 = dma.done [#allocation4], 128
    $region49: #{_fused_mlp_forward.1} parent=1 // pred_fallthru
      _
    %421 = vsyncpa [#allocation3], 1
    %422 = vsyncpa [#allocation6], 1
    %423 = vsyncpa [#allocation4], 1

</llo_original>
